<compile_context>
chip_gen: v7x
topology: tpu7x:2x2x1
jax: 0.10.0
libtpu: 0.0.40
codegen_flags: <defaults>
</compile_context>

<pallas_src>
import functools
import math

import jax
import jax.numpy as jnp
from jax import lax
from jax.experimental import pallas as pl
from jax.experimental.pallas import tpu as pltpu


_EPS = 0.001
_NEG_C0 = _EPS * math.log(_EPS)   # negated residue contribution of a class with p_not_K == 0


def _round_up(x, m):
    return ((x + m - 1) // m) * m


def _tile_kernel(x_ref, t_ref, out_ref, *, start_age, n_valid, tile_n, ragged):
    # x_ref: (W, TILE_N) logits (native dtype); t_ref: (1, TILE_N) f32 targets;
    # out_ref: (1, 1, 128) f32 per-tile partial sums (lanes 0..2).
    i = pl.program_id(0)
    x = x_ref[...].astype(jnp.float32)          # cast after load (no f32 copy in HBM)
    t = t_ref[...]                              # (1, TILE_N)
    W = x.shape[0]

    if ragged:
        # Unpadded ragged tail: the out-of-bounds columns of the last block hold
        # unspecified data.  Mask logits before exp so no inf/NaN is produced.
        col = lax.broadcasted_iota(jnp.int32, (1, tile_n), 1) + i * tile_n
        valid = col < n_valid                   # (1, TILE_N) bool
        x = jnp.where(valid, x, 0.0)

    # Softmax over classes (sublane axis).
    # NOTE: approx=True (EUP) was considered; kept exact to hold 1e-5 accuracy.
    x_max = jnp.max(x, axis=0, keepdims=True)
    e = jnp.exp(x - x_max)
    denom = jnp.sum(e, axis=0, keepdims=True)
    p = e * pl.reciprocal(denom, approx=False)  # (W, TILE_N)

    # (W, 1) age column; broadcasting covers the lane dim (no full-tile iotas).
    ages = (lax.broadcasted_iota(jnp.int32, (W, 1), 0).astype(jnp.float32)
            + jnp.float32(start_age))

    # Expected age and squared error vs target.
    mean = jnp.sum(p * ages, axis=0, keepdims=True)        # (1, TILE_N)
    mse = (mean - t) ** 2

    # Ground-truth class probability: class index == int(target), i.e.
    # ages == target + start_age (targets are integral floats).
    # TODO(synk): matches the reference one_hot(target); only meaningful for start_age == 0.
    gt_hit = ages == (t + jnp.float32(start_age))          # (W, TILE_N)
    prob_gt = jnp.sum(jnp.where(gt_hit, p, 0.0), axis=0, keepdims=True)

    # Residue entropy (negated): classes with p < prob_gt keep -(p+EPS)log(p+EPS),
    # the rest contribute the constant -EPS*log(EPS); negation folded into the
    # final scalar so no full-tile negate is spent.
    below = p < prob_gt                                    # (W, TILE_N) bool
    q = p + jnp.float32(_EPS)
    res_neg = jnp.where(below, q * jnp.log(q), jnp.float32(_NEG_C0))

    # Sublane reductions to (1, TILE_N) rows, then mask the ragged tail at row level.
    res_col = jnp.sum(res_neg, axis=0, keepdims=True)
    below_col = jnp.sum(below.astype(jnp.float32), axis=0, keepdims=True)

    if ragged:
        mse = jnp.where(valid, mse, 0.0)                   # where (not *): NaN-safe
        res_col = jnp.where(valid, res_col, 0.0)
        below_col = jnp.where(valid, below_col, 0.0)
        valid_cols = jnp.maximum(
            0, jnp.minimum(tile_n, n_valid - i * tile_n)).astype(jnp.float32)
    else:
        valid_cols = jnp.float32(tile_n)

    mse_sum = jnp.sum(mse)
    res_sum = -jnp.sum(res_col)
    # batch_average_K numerator: #(p >= prob_gt) = valid_cols*W - #(below).
    k_cnt = valid_cols * jnp.float32(W) - jnp.sum(below_col)

    # Pack the three partial sums into lanes 0..2 of a single 128-lane row.
    lane = lax.broadcasted_iota(jnp.int32, (1, 128), 1)
    row = (jnp.where(lane == 0, mse_sum, 0.0)
           + jnp.where(lane == 1, res_sum, 0.0)
           + jnp.where(lane == 2, k_cnt, 0.0))
    out_ref[...] = row[None]


def mean_residue_loss_adaptive(logits, target, *, lambda_1, lambda_2,
                               start_age, end_age, K=6, tile_n=32768):
    """Returns (lambda_1*mean_loss, lambda_2*residue_loss, batch_average_K)."""
    # TODO(synk): K is unused in the reference forward pass (kept for signature parity).
    N, W = logits.shape
    assert W == end_age + 1 - start_age, "logits width must match age range"

    # Lane-dense layout: batch on lanes, classes on sublanes.  Native logits dtype
    # is kept (cast to f32 inside the kernel after the load).  No padding: ragged
    # last tile is masked in-kernel.
    xt = jnp.transpose(logits)                         # (W, N)
    t_row = target.astype(jnp.float32).reshape(1, N)   # (1, N)

    if N <= 128:
        tile = N                                       # block == full lane dim (legal)
    else:
        n128 = _round_up(N, 128)
        # Cap the tile so num_tiles >= 2: both v7x TensorCores get work.
        half = _round_up((n128 + 1) // 2, 128)
        tile = max(128, min(_round_up(int(tile_n), 128), half))
    num_tiles = (N + tile - 1) // tile
    ragged = (N % tile) != 0

    kernel = functools.partial(
        _tile_kernel, start_age=start_age, n_valid=N, tile_n=tile, ragged=ragged)

    # VMEM budget sized to the actual tile: double-buffered inputs + an estimate
    # of the live full-tile f32 temporaries + headroom.
    x_bytes = jnp.dtype(logits.dtype).itemsize
    vmem_est = (2 * W * tile * x_bytes            # logits blocks (double-buffered)
                + 2 * tile * 4                    # target rows
                + 6 * W * tile * 4                # in-kernel full-tile temporaries
                + (4 << 20))                      # headroom / internal scratch
    vmem_limit = int(min(max(vmem_est, 16 << 20), 100 << 20))

    partials = pl.pallas_call(
        kernel,
        out_shape=jax.ShapeDtypeStruct((num_tiles, 1, 128), jnp.float32),
        grid=(num_tiles,),
        in_specs=[
            pl.BlockSpec((W, tile), lambda i: (0, i)),
            pl.BlockSpec((1, tile), lambda i: (0, i)),
        ],
        out_specs=pl.BlockSpec((1, 1, 128), lambda i: (i, 0, 0)),
        compiler_params=pltpu.CompilerParams(
            dimension_semantics=("parallel",),   # independent tiles -> both TCs on v7x
            vmem_limit_bytes=vmem_limit,
        ),
    )(xt, t_row)

    sums = jnp.sum(partials, axis=0)[0]                # (128,)
    inv_n = 1.0 / N                                    # fold /N and /2 into multiplies
    mean_loss = (lambda_1 * 0.5 * inv_n) * sums[0]
    residue_loss = (lambda_2 * inv_n) * sums[1]
    batch_avg_k = inv_n * sums[2]
    return mean_loss, residue_loss, batch_avg_k


def _reference(logits, target, *, lambda_1, lambda_2, start_age, end_age):
    # pure-JAX mirror of the PyTorch module for sanity checking
    N, W = logits.shape
    p = jax.nn.softmax(logits.astype(jnp.float32), axis=1)
    a = jnp.arange(start_age, end_age + 1, dtype=jnp.float32)
    mean = jnp.sum(p * a, axis=1)
    mean_loss = jnp.mean((mean - target) ** 2) / 2.0
    EPS = 0.001
    pos = jax.nn.one_hot(target.astype(jnp.int32), W, dtype=jnp.float32)
    prob_gt = jnp.sum(pos * p, axis=1, keepdims=True)
    pos_no_K = (p < prob_gt).astype(jnp.float32)
    p_not_K = pos_no_K * p
    residue_loss = jnp.mean(jnp.sum(-(p_not_K + EPS) * jnp.log(p_not_K + EPS), axis=1))
    batch_avg_k = jnp.sum(pos_no_K == 0.0) / N
    return lambda_1 * mean_loss, lambda_2 * residue_loss, jnp.float32(batch_avg_k)


if __name__ == "__main__":
    start_age, end_age = 0, 31
    W = end_age + 1 - start_age
    lambda_1, lambda_2 = 0.2, 0.05

    key = jax.random.PRNGKey(0)
    k1, k2, k3, k4, k5, k6 = jax.random.split(key, 6)

    # Case 1: tiny batch (single sub-128 tile, block == full lane dim).
    logits_a = jax.random.normal(k1, (8, W), dtype=jnp.float32)
    target_a = jax.random.randint(k2, (8,), 0, W).astype(jnp.float32)

    # Case 2: ragged multi-tile grid (tile capped to 256 by the >=2-tile rule;
    # last tile only 44 valid lanes).
    logits_b = jax.random.normal(k3, (300, W), dtype=jnp.float32)
    target_b = jax.random.randint(k4, (300,), 0, W).astype(jnp.float32)

    # Case 3: ragged grid where the last tile has a single valid lane.
    logits_c = jax.random.normal(k5, (257, W), dtype=jnp.float32)
    target_c = jax.random.randint(k6, (257,), 0, W).astype(jnp.float32)

    for lg, tg in ((logits_a, target_a), (logits_b, target_b), (logits_c, target_c)):
        out = mean_residue_loss_adaptive(
            lg, tg, lambda_1=lambda_1, lambda_2=lambda_2,
            start_age=start_age, end_age=end_age)
        out = jax.block_until_ready(out)
        ref = _reference(lg, tg, lambda_1=lambda_1, lambda_2=lambda_2,
                         start_age=start_age, end_age=end_age)
        for got, want in zip(out, ref):
            assert jnp.allclose(got, want, rtol=1e-5, atol=1e-5), (got, want)

    print("KERNEL_OK")
</pallas_src>

<mosaic_0001>
module attributes {stable_mosaic.version = 11 : i64} {
  func.func @_tile_kernel(%arg0: i32, %arg1: memref<32x8xf32, #tpu.memory_space<vmem>>, %arg2: memref<1x8xf32, #tpu.memory_space<vmem>>, %arg3: memref<1x1x128xf32, #tpu.memory_space<vmem>>) attributes {dimension_semantics = [#tpu.dimension_semantics<parallel>], iteration_bounds = array<i64: 1>, scalar_prefetch = 0 : i64, scratch_operands = 0 : i64, tpu.core_type = #tpu.core_type<tc>, window_params = [{transform_indices = @transform_0, window_bounds = array<i64: 32, 8>}, {transform_indices = @transform_1, window_bounds = array<i64: 1, 8>}, {transform_indices = @transform_2, window_bounds = array<i64: 1, 1, 128>}]} {
    %c0 = arith.constant 0 : index
    %c0_0 = arith.constant 0 : index
    %0 = vector.load %arg1[%c0, %c0_0] : memref<32x8xf32, #tpu.memory_space<vmem>>, vector<32x8xf32>
    %c0_1 = arith.constant 0 : index
    %c0_2 = arith.constant 0 : index
    %1 = vector.load %arg2[%c0_1, %c0_2] : memref<1x8xf32, #tpu.memory_space<vmem>>, vector<1x8xf32>
    %cst = arith.constant dense<0xFF800000> : vector<8xf32>
    %2 = vector.multi_reduction <maximumf>, %0, %cst [0] : vector<32x8xf32> to vector<8xf32>
    %3 = vector.shape_cast %2 : vector<8xf32> to vector<1x8xf32>
    %4 = vector.broadcast %3 : vector<1x8xf32> to vector<32x8xf32>
    %5 = arith.subf %0, %4 : vector<32x8xf32>
    %6 = math.exp %5 : vector<32x8xf32>
    %cst_3 = arith.constant dense<0.000000e+00> : vector<8xf32>
    %7 = vector.multi_reduction <add>, %6, %cst_3 [0] : vector<32x8xf32> to vector<8xf32>
    %8 = vector.shape_cast %7 : vector<8xf32> to vector<1x8xf32>
    %9 = tpu.reciprocal %8 : vector<1x8xf32> -> vector<1x8xf32>
    %10 = vector.broadcast %9 : vector<1x8xf32> to vector<32x8xf32>
    %11 = arith.mulf %6, %10 : vector<32x8xf32>
    %12 = tpu.iota {dimensions = array<i32: 0>} : vector<32x1xi32>
    %13 = arith.sitofp %12 : vector<32x1xi32> to vector<32x1xf32>
    %cst_4 = arith.constant 0.000000e+00 : f32
    %14 = vector.broadcast %cst_4 : f32 to vector<32x1xf32>
    %15 = arith.addf %13, %14 : vector<32x1xf32>
    %16 = vector.broadcast %15 : vector<32x1xf32> to vector<32x8xf32>
    %17 = arith.mulf %11, %16 : vector<32x8xf32>
    %cst_5 = arith.constant dense<0.000000e+00> : vector<8xf32>
    %18 = vector.multi_reduction <add>, %17, %cst_5 [0] : vector<32x8xf32> to vector<8xf32>
    %19 = vector.shape_cast %18 : vector<8xf32> to vector<1x8xf32>
    %20 = arith.subf %19, %1 : vector<1x8xf32>
    %21 = arith.mulf %20, %20 : vector<1x8xf32>
    %cst_6 = arith.constant 0.000000e+00 : f32
    %22 = vector.broadcast %cst_6 : f32 to vector<1x8xf32>
    %23 = arith.addf %1, %22 : vector<1x8xf32>
    %24 = vector.broadcast %15 : vector<32x1xf32> to vector<32x8xf32>
    %25 = vector.broadcast %23 : vector<1x8xf32> to vector<32x8xf32>
    %26 = arith.cmpf oeq, %24, %25 : vector<32x8xf32>
    %cst_7 = arith.constant 0.000000e+00 : f32
    %27 = vector.broadcast %cst_7 : f32 to vector<32x8xf32>
    %28 = arith.select %26, %11, %27 : vector<32x8xi1>, vector<32x8xf32>
    %cst_8 = arith.constant dense<0.000000e+00> : vector<8xf32>
    %29 = vector.multi_reduction <add>, %28, %cst_8 [0] : vector<32x8xf32> to vector<8xf32>
    %30 = vector.shape_cast %29 : vector<8xf32> to vector<1x8xf32>
    %31 = vector.broadcast %30 : vector<1x8xf32> to vector<32x8xf32>
    %32 = arith.cmpf olt, %11, %31 : vector<32x8xf32>
    %cst_9 = arith.constant 1.000000e-03 : f32
    %33 = vector.broadcast %cst_9 : f32 to vector<32x8xf32>
    %34 = arith.addf %11, %33 : vector<32x8xf32>
    %35 = math.log %34 : vector<32x8xf32>
    %36 = arith.mulf %34, %35 : vector<32x8xf32>
    %cst_10 = arith.constant -0.0069077555 : f32
    %37 = vector.broadcast %cst_10 : f32 to vector<32x8xf32>
    %38 = arith.select %32, %36, %37 : vector<32x8xi1>, vector<32x8xf32>
    %cst_11 = arith.constant dense<0.000000e+00> : vector<8xf32>
    %39 = vector.multi_reduction <add>, %38, %cst_11 [0] : vector<32x8xf32> to vector<8xf32>
    %40 = vector.shape_cast %39 : vector<8xf32> to vector<1x8xf32>
    %41 = arith.extui %32 : vector<32x8xi1> to vector<32x8xi32>
    %42 = arith.sitofp %41 : vector<32x8xi32> to vector<32x8xf32>
    %cst_12 = arith.constant dense<0.000000e+00> : vector<8xf32>
    %43 = vector.multi_reduction <add>, %42, %cst_12 [0] : vector<32x8xf32> to vector<8xf32>
    %44 = vector.shape_cast %43 : vector<8xf32> to vector<1x8xf32>
    %45 = vector.shape_cast %21 : vector<1x8xf32> to vector<1x1x8xf32>
    %cst_13 = arith.constant dense<0.000000e+00> : vector<1xf32>
    %46 = vector.multi_reduction <add>, %45, %cst_13 [1, 2] : vector<1x1x8xf32> to vector<1xf32>
    %47 = vector.shape_cast %46 : vector<1xf32> to vector<1x1x1xf32>
    %48 = vector.extract %47[0, 0, 0] : f32 from vector<1x1x1xf32>
    %49 = vector.shape_cast %40 : vector<1x8xf32> to vector<1x1x8xf32>
    %cst_14 = arith.constant dense<0.000000e+00> : vector<1xf32>
    %50 = vector.multi_reduction <add>, %49, %cst_14 [1, 2] : vector<1x1x8xf32> to vector<1xf32>
    %51 = vector.shape_cast %50 : vector<1xf32> to vector<1x1x1xf32>
    %52 = vector.extract %51[0, 0, 0] : f32 from vector<1x1x1xf32>
    %cst_15 = arith.constant 0.000000e+00 : f32
    %53 = arith.subf %cst_15, %52 : f32
    %cst_16 = arith.constant 8.000000e+00 : f32
    %cst_17 = arith.constant 3.200000e+01 : f32
    %54 = arith.mulf %cst_16, %cst_17 : f32
    %55 = vector.shape_cast %44 : vector<1x8xf32> to vector<1x1x8xf32>
    %cst_18 = arith.constant dense<0.000000e+00> : vector<1xf32>
    %56 = vector.multi_reduction <add>, %55, %cst_18 [1, 2] : vector<1x1x8xf32> to vector<1xf32>
    %57 = vector.shape_cast %56 : vector<1xf32> to vector<1x1x1xf32>
    %58 = vector.extract %57[0, 0, 0] : f32 from vector<1x1x1xf32>
    %59 = arith.subf %54, %58 : f32
    %60 = tpu.iota {dimensions = array<i32: 1>} : vector<1x128xi32>
    %c0_i32 = arith.constant 0 : i32
    %61 = vector.broadcast %c0_i32 : i32 to vector<1x128xi32>
    %62 = arith.cmpi eq, %60, %61 : vector<1x128xi32>
    %cst_19 = arith.constant 0.000000e+00 : f32
    %63 = vector.broadcast %48 : f32 to vector<1x128xf32>
    %64 = vector.broadcast %cst_19 : f32 to vector<1x128xf32>
    %65 = arith.select %62, %63, %64 : vector<1x128xi1>, vector<1x128xf32>
    %c1_i32 = arith.constant 1 : i32
    %66 = vector.broadcast %c1_i32 : i32 to vector<1x128xi32>
    %67 = arith.cmpi eq, %60, %66 : vector<1x128xi32>
    %cst_20 = arith.constant 0.000000e+00 : f32
    %68 = vector.broadcast %53 : f32 to vector<1x128xf32>
    %69 = vector.broadcast %cst_20 : f32 to vector<1x128xf32>
    %70 = arith.select %67, %68, %69 : vector<1x128xi1>, vector<1x128xf32>
    %71 = arith.addf %65, %70 : vector<1x128xf32>
    %c2_i32 = arith.constant 2 : i32
    %72 = vector.broadcast %c2_i32 : i32 to vector<1x128xi32>
    %73 = arith.cmpi eq, %60, %72 : vector<1x128xi32>
    %cst_21 = arith.constant 0.000000e+00 : f32
    %74 = vector.broadcast %59 : f32 to vector<1x128xf32>
    %75 = vector.broadcast %cst_21 : f32 to vector<1x128xf32>
    %76 = arith.select %73, %74, %75 : vector<1x128xi1>, vector<1x128xf32>
    %77 = arith.addf %71, %76 : vector<1x128xf32>
    %78 = vector.shape_cast %77 : vector<1x128xf32> to vector<1x1x128xf32>
    %c0_22 = arith.constant 0 : index
    %c0_23 = arith.constant 0 : index
    %c0_24 = arith.constant 0 : index
    %79 = vector.load %arg3[%c0_22, %c0_23, %c0_24] : memref<1x1x128xf32, #tpu.memory_space<vmem>>, vector<1x1x128xf32>
    tpu.vector_store %arg3[%c0_22, %c0_23, %c0_24], %78 {strides = array<i32>} : memref<1x1x128xf32, #tpu.memory_space<vmem>>, vector<1x1x128xf32>,
    return
  }
  func.func @transform_0(%arg0: i32) -> (i32, i32) {
    %c0_i32 = arith.constant 0 : i32
    %c0_i32_0 = arith.constant 0 : i32
    return %c0_i32, %arg0 : i32, i32
  }
  func.func @transform_1(%arg0: i32) -> (i32, i32) {
    %c0_i32 = arith.constant 0 : i32
    %c0_i32_0 = arith.constant 0 : i32
    return %c0_i32, %arg0 : i32, i32
  }
  func.func @transform_2(%arg0: i32) -> (i32, i32, i32) {
    %c0_i32 = arith.constant 0 : i32
    %c0_i32_0 = arith.constant 0 : i32
    %c0_i32_1 = arith.constant 0 : i32
    return %arg0, %c0_i32, %c0_i32_0 : i32, i32, i32
  }
}

</mosaic_0001>

<llo_original>
// kernel: tpu_custom_call.1
$region0: #{tpu_custom_call.1}
  #allocation0 [shape = 'u32[]', space=smem, size = 0x4, offset = 0x4, fixed_abs, tag = 'smem constant byte address 0x4 - core index']
  #allocation1 [shape = 'u32[144,128]{1,0:T(1,128)}', space=vmem, size = 0x12000, scoped, tag = 'internal scratch']
  %s0 = inlined_call_operand.vmem [shape: f32[32,8], index: 0, kind: input, shape index: {}]
  %s1 = inlined_call_operand.vmem [shape: f32[1,8], index: 1, kind: input, shape index: {}]
  %s2 = inlined_call_operand.hbm [shape: f32[1,1,128], index: 2, kind: output, shape index: {}]
  %s3 = sld [smem:[#allocation0]]
  $region18: #{tpu_custom_call.1} parent=0
    _
  %s5 = ssub.s32 1, %s3
  %s6 = scalar_select 0, %s5, %s3
  $region1: #{tpu_custom_call.1} parent=0
    #allocation2 [shape = 'u8[512]{0}', space=vmem, size = 0x400, scoped, tag = 'output window, operand 0, single buffered']
    #allocation3 [shape = 's32[1]{0}', space=sflag, size = 0x4, scoped, tag = 'scoped memory for tpu_custom_call.1']
    %7 = vsyncpa [#allocation3], 0
    // Predicated region
    $region2: #{tpu_custom_call.1} parent=1 // pred_check
      _
    $region3: #{tpu_custom_call.1} parent=1 // pred_check_branch
      %9 = sbr.rel (0) target = $region5
    $region4: #{tpu_custom_call.1} parent=1 // pred_region
      _
    $region5: #{tpu_custom_call.1} parent=1 // pred_fallthru
      _
    // Predicated region
    $region6: #{tpu_custom_call.1} parent=1 // pred_check
      _
    $region7: #{tpu_custom_call.1} parent=1 // pred_check_branch
      %11 = sbr.rel (0) target = $region9
    $region8: #{tpu_custom_call.1} parent=1 // pred_region
      _
    $region9: #{tpu_custom_call.1} parent=1 // pred_fallthru
      _
    %v12 = vld [vmem:[%s0] sm:$0xff]
    %v13 = vld [vmem:[%s0 + $0x8] sm:$0xff]
    %v14 = vld [vmem:[%s0 + $0x10] sm:$0xff]
    %v15 = vld [vmem:[%s0 + $0x18] sm:$0xff]
    %v16 = vld [vmem:[%s1] sm:$0x1]
    %vm17 = vcmask 64512
    %v18 = vsel %vm17, %v12, -inf
    %v19 = vsel %vm17, %v13, -inf
    %v20 = vsel %vm17, %v14, -inf
    %v21 = vsel %vm17, %v15, -inf
    %v22 = vmax.f32 %v18, %v19
    %v23 = vmax.f32 %v20, %v21
    %v24 = vmax.f32 %v22, %v23
    %v25 = vrot.slane %v24, 4
    %v26 = vmax.f32 %v24, %v25
    %v27 = vrot.slane %v26, 2
    %v28 = vmax.f32 %v26, %v27
    %v29 = vrot.slane %v28, 1
    %v30 = vmax.f32 %v28, %v29
    %v31 = vsub.f32 %v12, %v30
    %v32 = vsub.f32 %v13, %v30
    %v33 = vsub.f32 %v14, %v30
    %v34 = vsub.f32 %v15, %v30
    %v35 = vmul.f32 %v31, 1.442695
    %v36 = vpow.pop %v35
    %v37 = vmul.f32 %v32, 1.442695
    %v38 = vpow.pop %v37
    %v39 = vmul.f32 %v33, 1.442695
    %v40 = vpow.pop %v39
    %v41 = vmul.f32 %v34, 1.442695
    %v42 = vpow.pop %v41
    %v43 = vsel %vm17, %v36, 0.0
    %v44 = vsel %vm17, %v38, 0.0
    %v45 = vadd.f32 %v43, %v44
    %v46 = vsel %vm17, %v40, 0.0
    %v47 = vadd.f32 %v45, %v46
    %v48 = vsel %vm17, %v42, 0.0
    %v49 = vadd.f32 %v47, %v48
    %v50 = vrot.slane %v49, 4
    %v51 = vadd.f32 %v49, %v50
    %v52 = vrot.slane %v51, 2
    %v53 = vadd.f32 %v51, %v52
    %v54 = vrot.slane %v53, 1
    %v55 = vadd.f32 %v53, %v54
    %v56 = vrcp.pop %v55
    %v57 = vmul.f32 %v36, %v56
    %v58 = vmul.f32 %v38, %v56
    %v59 = vmul.f32 %v40, %v56
    %v60 = vmul.f32 %v42, %v56
    %v61 = vlaneseq
    %v62 = vshrl.u32 %v61, 7
    %v63 = vadd.s32 %v62, 8
    %v64 = vadd.s32 %v62, 16
    %v65 = vadd.s32 %v62, 24
    %v66 = vcvt.s32.f32 %v62
    %v67 = vcvt.s32.f32 %v63
    %v68 = vcvt.s32.f32 %v64
    %v69 = vcvt.s32.f32 %v65
    %v70 = vadd.f32 %v66, 0.0
    %v71 = vadd.f32 %v67, 0.0
    %v72 = vadd.f32 %v68, 0.0
    %v73 = vadd.f32 %v69, 0.0
    %v74 = vmul.f32 %v57, %v70
    %v75 = vmul.f32 %v58, %v71
    %v76 = vmul.f32 %v59, %v72
    %v77 = vmul.f32 %v60, %v73
    %v78 = vsel %vm17, %v74, 0.0
    %v79 = vsel %vm17, %v75, 0.0
    %v80 = vadd.f32 %v78, %v79
    %v81 = vsel %vm17, %v76, 0.0
    %v82 = vadd.f32 %v80, %v81
    %v83 = vsel %vm17, %v77, 0.0
    %v84 = vadd.f32 %v82, %v83
    %v85 = vrot.slane %v84, 4
    %v86 = vadd.f32 %v84, %v85
    %v87 = vrot.slane %v86, 2
    %v88 = vadd.f32 %v86, %v87
    %v89 = vrot.slane %v88, 1
    %v90 = vadd.f32 %v88, %v89
    %v91 = vsub.f32 %v90, %v16
    %v92 = vmul.f32 %v91, %v91
    %v93 = vadd.f32 %v16, 0.0
    %v95 = vlaneseq
    %v96 = vshrl.u32 %v95, 7
    %v97 = vsub.s32 0, %v96
    %v98 = vrot.slane %v93, %v97
    %vm100 = vcmp.eq.f32.partialorder %v70, %v98
    %vm101 = vcmp.eq.f32.partialorder %v71, %v98
    %vm102 = vcmp.eq.f32.partialorder %v72, %v98
    %vm103 = vcmp.eq.f32.partialorder %v73, %v98
    %v104 = vsel %vm100, %v57, 0.0
    %v105 = vsel %vm101, %v58, 0.0
    %v106 = vsel %vm102, %v59, 0.0
    %v107 = vsel %vm103, %v60, 0.0
    %v108 = vsel %vm17, %v104, 0.0
    %v109 = vsel %vm17, %v105, 0.0
    %v110 = vadd.f32 %v108, %v109
    %v111 = vsel %vm17, %v106, 0.0
    %v112 = vadd.f32 %v110, %v111
    %v113 = vsel %vm17, %v107, 0.0
    %v114 = vadd.f32 %v112, %v113
    %v115 = vrot.slane %v114, 4
    %v116 = vadd.f32 %v114, %v115
    %v117 = vrot.slane %v116, 2
    %v118 = vadd.f32 %v116, %v117
    %v119 = vrot.slane %v118, 1
    %v120 = vadd.f32 %v118, %v119
    %vm121 = vcmp.lt.f32.partialorder %v57, %v120
    %vm122 = vcmp.lt.f32.partialorder %v58, %v120
    %vm123 = vcmp.lt.f32.partialorder %v59, %v120
    %vm124 = vcmp.lt.f32.partialorder %v60, %v120
    %v125 = vadd.f32 %v57, 0.001
    %v126 = vadd.f32 %v58, 0.001
    %v127 = vadd.f32 %v59, 0.001
    %v128 = vadd.f32 %v60, 0.001
    %v129 = vlog2.pop %v125
    %v130 = vmul.f32 %v129, 0.6931472
    %v131 = vlog2.pop %v126
    %v132 = vmul.f32 %v131, 0.6931472
    %v133 = vlog2.pop %v127
    %v134 = vmul.f32 %v133, 0.6931472
    %v135 = vlog2.pop %v128
    %v136 = vmul.f32 %v135, 0.6931472
    %v137 = vmul.f32 %v125, %v130
    %v138 = vmul.f32 %v126, %v132
    %v139 = vmul.f32 %v127, %v134
    %v140 = vmul.f32 %v128, %v136
    %v141 = vsel %vm121, %v137, -0.0069077555
    %v142 = vsel %vm122, %v138, -0.0069077555
    %v143 = vsel %vm123, %v139, -0.0069077555
    %v144 = vsel %vm124, %v140, -0.0069077555
    %v145 = vsel %vm17, %v141, 0.0
    %v146 = vsel %vm17, %v142, 0.0
    %v147 = vadd.f32 %v145, %v146
    %v148 = vsel %vm17, %v143, 0.0
    %v149 = vadd.f32 %v147, %v148
    %v150 = vsel %vm17, %v144, 0.0
    %v151 = vadd.f32 %v149, %v150
    %v152 = vrot.slane %v151, 4
    %v153 = vadd.f32 %v151, %v152
    %v154 = vrot.slane %v153, 2
    %v155 = vadd.f32 %v153, %v154
    %v156 = vrot.slane %v155, 1
    %v157 = vadd.f32 %v155, %v156
    %v158 = vsel %vm121, 1, 0
    %v159 = vsel %vm122, 1, 0
    %v160 = vsel %vm123, 1, 0
    %v161 = vsel %vm124, 1, 0
    %v162 = vcvt.s32.f32 %v158
    %v163 = vcvt.s32.f32 %v159
    %v164 = vcvt.s32.f32 %v160
    %v165 = vcvt.s32.f32 %v161
    %v166 = vsel %vm17, %v162, 0.0
    %v167 = vsel %vm17, %v163, 0.0
    %v168 = vadd.f32 %v166, %v167
    %v169 = vsel %vm17, %v164, 0.0
    %v170 = vadd.f32 %v168, %v169
    %v171 = vsel %vm17, %v165, 0.0
    %v172 = vadd.f32 %v170, %v171
    %v173 = vrot.slane %v172, 4
    %v174 = vadd.f32 %v172, %v173
    %v175 = vrot.slane %v174, 2
    %v176 = vadd.f32 %v174, %v175
    %v177 = vrot.slane %v176, 1
    %v178 = vadd.f32 %v176, %v177
    %vm179 = vcmask 57344
    %v180 = vsel %vm179, %v92, 0.0
    %181 = vadd.xlane.f32.xlu0 %v180
    %v182 = vpop.xlane.xlu0 %181
    %v183 = vrot.slane %v182, 4
    %v184 = vadd.f32 %v182, %v183
    %v185 = vrot.slane %v184, 2
    %v186 = vadd.f32 %v184, %v185
    %v187 = vrot.slane %v186, 1
    %v188 = vadd.f32 %v186, %v187
    %s189 = vtos %v188
    %v190 = vsel %vm179, %v157, 0.0
    %191 = vadd.xlane.f32.xlu0 %v190
    %v192 = vpop.xlane.xlu0 %191
    %v193 = vrot.slane %v192, 4
    %v194 = vadd.f32 %v192, %v193
    %v195 = vrot.slane %v194, 2
    %v196 = vadd.f32 %v194, %v195
    %v197 = vrot.slane %v196, 1
    %v198 = vadd.f32 %v196, %v197
    %s199 = vtos %v198
    %s200 = ssub.f32 0.0, %s199
    %v201 = vsel %vm179, %v178, 0.0
    %202 = vadd.xlane.f32.xlu0 %v201
    %v203 = vpop.xlane.xlu0 %202
    %v204 = vrot.slane %v203, 4
    %v205 = vadd.f32 %v203, %v204
    %v206 = vrot.slane %v205, 2
    %v207 = vadd.f32 %v205, %v206
    %v208 = vrot.slane %v207, 1
    %v209 = vadd.f32 %v207, %v208
    %s210 = vtos %v209
    %s211 = ssub.f32 256.0, %s210
    %v212 = vlaneseq
    %v213 = vand.u32 %v212, 127
    %vm214 = vcmp.eq.s32.totalorder %v213, 0
    %v215 = vstv %s189
    %v216 = vsel %vm214, %v215, 0.0
    %vm217 = vcmp.eq.s32.totalorder %v213, 1
    %v218 = vstv %s200
    %v219 = vsel %vm217, %v218, 0.0
    %v220 = vadd.f32 %v216, %v219
    %vm221 = vcmp.eq.s32.totalorder %v213, 2
    %v222 = vstv %s211
    %v223 = vsel %vm221, %v222, 0.0
    %v224 = vadd.f32 %v220, %v223
    %225 = vst [vmem:[#allocation2] sm:$0x1] %v224
    // Predicated region
    $region10: #{tpu_custom_call.1} parent=1 // pred_check
      _
    $region11: #{tpu_custom_call.1} parent=1 // pred_check_branch
      %227 = sbr.rel (0) target = $region13
    $region12: #{tpu_custom_call.1} parent=1 // pred_region
      %s229 = ssub.s32 16, 16
      %230 = vsyncadd [#allocation3], %s229
      %s232 = sshll.u32 [#allocation2], 4
      %s233 = int_to_ptr.vmem [resolvable:$true] %s232
      %235 = dma.vmem_to_hbm [thread:$0]  %s233, 16, %s2, [#allocation3]
    $region13: #{tpu_custom_call.1} parent=1 // pred_fallthru
      _
    // Predicated region
    $region14: #{tpu_custom_call.1} parent=1 // pred_check
      _
    $region15: #{tpu_custom_call.1} parent=1 // pred_check_branch
      %237 = sbr.rel (0) target = $region17
    $region16: #{tpu_custom_call.1} parent=1 // pred_region
      %238 = dma.done [#allocation3], 16
    $region17: #{tpu_custom_call.1} parent=1 // pred_fallthru
      _
    %239 = vsyncpa [#allocation3], 1

</llo_original>
